<compile_context>
chip_gen: v7x
topology: tpu7x:2x2x1
jax: 0.10.0
libtpu: 0.0.40
codegen_flags: <defaults>
</compile_context>

<pallas_src>
import math

import jax
import jax.numpy as jnp
from jax.experimental import pallas as pl
from jax.experimental.pallas import tpu as pltpu

_NEG_BIAS = -1e30  # padded-class bias => exp underflows to 0 => softmax weight 0


def _round_up(x: int, m: int) -> int:
    return ((x + m - 1) // m) * m


def _vmem_capacity_bytes() -> int:
    """Physical VMEM per TensorCore; conservative (v7x) fallback if unknown."""
    try:
        return int(pltpu.get_tpu_info().vmem_capacity_bytes)
    except Exception:
        return 64 * 1024 * 1024


def _choose_batch_tile(batch, d_block, c, c_pad, budget_bytes,
                       x_itemsize, w_itemsize, w_buffers):
    """Largest multiple-of-8 batch tile whose working set fits the budget."""
    # Resident across batch tiles: W block(s) (w_buffers copies) + f32 bias.
    resident = w_buffers * d_block * c_pad * w_itemsize + c_pad * 4
    # Per batch row: double-buffered x slab + f32 output slab, plus ~4 f32
    # (TB, C_pad) kernel intermediates (logits / e / probs / accumulator).
    per_row = 2 * (d_block * x_itemsize + c * 4) + 4 * c_pad * 4
    avail = budget_bytes - resident
    if avail < per_row * 8:
        # Should be unreachable: an over-budget W is routed to the K-blocked
        # path before we get here.
        avail = per_row * 8
    tb = int(avail // per_row)
    tb = max(8, min(tb, 2048))          # 512-2048 is the measured sweet spot
    tb = (tb // 8) * 8
    tb = min(tb, _round_up(max(batch, 1), 8))
    # Keep >= 4 grid steps when the batch allows it, so the "parallel" axis
    # can shard across v7x's 2 TensorCores and DMA/compute actually pipeline.
    if batch >= 32:
        tb = min(tb, max(8, _round_up((batch + 3) // 4, 8)))
    return max(8, tb)


def _logreg_kernel(x_ref, w_ref, b_ref, o_ref):
    # logits = x @ W + b : MXU bf16 matmul, f32 accumulate; W/b VMEM-resident.
    logits = jnp.dot(x_ref[...], w_ref[...],
                     preferred_element_type=jnp.float32) + b_ref[...]
    # Numerically-stable softmax along the last axis (== torch dim=-1).
    # Padded classes carry a -1e30 bias, so exp() underflows to exactly 0 and
    # they perturb neither the max nor the sum.
    m = jnp.max(logits, axis=-1, keepdims=True)
    e = jnp.exp(logits - m)
    denom = jnp.sum(e, axis=-1, keepdims=True)
    probs = e / denom                        # exact divide: row sums == 1 (f32)
    o_ref[...] = probs[:, : o_ref.shape[-1]].astype(o_ref.dtype)


def _logreg_kernel_kblocked(x_ref, w_ref, b_ref, o_ref, acc_ref):
    k = pl.program_id(1)

    @pl.when(k == 0)
    def _():
        acc_ref[...] = jnp.zeros_like(acc_ref)

    acc_ref[...] += jnp.dot(x_ref[...], w_ref[...],
                            preferred_element_type=jnp.float32)

    @pl.when(k == pl.num_programs(1) - 1)
    def _():
        logits = acc_ref[...] + b_ref[...]
        m = jnp.max(logits, axis=-1, keepdims=True)
        e = jnp.exp(logits - m)
        denom = jnp.sum(e, axis=-1, keepdims=True)
        probs = e / denom
        o_ref[...] = probs[:, : o_ref.shape[-1]].astype(o_ref.dtype)


def logistic_regression_forward(x, w, b, *, block_batch=None, block_k=None,
                                compute_dtype=jnp.bfloat16):
    """softmax(x @ w + b, axis=-1) via a batch-tiled Pallas kernel.

    x: (B, D)
    w: (D, C)   (transpose of torch's (C, D) linear.weight)
    b: (C,)
    """
    B, D = x.shape
    C = w.shape[1]
    C_pad = _round_up(C, 128)

    x_itemsize = w_itemsize = jnp.dtype(compute_dtype).itemsize

    # Lane-dense padded weight / bias (internal only; the output stays (B, C)).
    w_p = jnp.pad(w.astype(compute_dtype), ((0, 0), (0, C_pad - C)))
    b_p = jnp.pad(b.astype(jnp.float32).reshape(1, C),
                  ((0, 0), (0, C_pad - C)), constant_values=_NEG_BIAS)
    x_c = x.astype(compute_dtype)

    vmem_cap = _vmem_capacity_bytes()
    vmem_limit = min(vmem_cap * 3 // 4, 96 * 1024 * 1024)
    working_budget = int(vmem_limit * 0.75)

    w_resident = D * C_pad * w_itemsize          # single-buffered resident W
    use_k_blocking = (block_k is not None) or (w_resident > 0.4 * working_budget)

    out_shape = jax.ShapeDtypeStruct((B, C), jnp.float32)

    def build_and_call(single_buffer_weights):
        # Grid-invariant inputs (index_map always (0,0)) don't need a second
        # pipeline buffer; Buffered(1) halves their VMEM footprint.
        w_kwargs = ({"pipeline_mode": pl.Buffered(1)}
                    if single_buffer_weights else {})

        if not use_k_blocking:
            TB = (block_batch if block_batch is not None else
                  _choose_batch_tile(B, D, C, C_pad, working_budget,
                                     x_itemsize, w_itemsize, w_buffers=1))
            TB = max(8, _round_up(TB, 8))
            grid = (pl.cdiv(B, TB),)
            return pl.pallas_call(
                _logreg_kernel,
                out_shape=out_shape,
                grid_spec=pltpu.PrefetchScalarGridSpec(
                    num_scalar_prefetch=0,
                    grid=grid,
                    in_specs=[
                        pl.BlockSpec((TB, D), lambda i: (i, 0)),           # x tile
                        pl.BlockSpec((D, C_pad), lambda i: (0, 0), **w_kwargs),
                        pl.BlockSpec((1, C_pad), lambda i: (0, 0), **w_kwargs),
                    ],
                    out_specs=pl.BlockSpec((TB, C), lambda i: (i, 0)),
                ),
                compiler_params=pltpu.CompilerParams(
                    dimension_semantics=("parallel",),
                    vmem_limit_bytes=vmem_limit),
            )(x_c, w_p, b_p)

        # ---- K-blocked path: grid axis over D + VMEM f32 accumulator -------
        TK = block_k if block_k is not None else 512
        TK = max(128, (TK // 128) * 128)
        TK = min(TK, _round_up(D, 128))
        D_pad = _round_up(D, TK)
        # Zero-pad the reduction dim so partial K blocks never read garbage
        # into the accumulator (zeros contribute nothing to the dot).
        x_k = x_c if D_pad == D else jnp.pad(x_c, ((0, 0), (0, D_pad - D)))
        w_k = w_p if D_pad == D else jnp.pad(w_p, ((0, D_pad - D), (0, 0)))

        TB = (block_batch if block_batch is not None else
              _choose_batch_tile(B, TK, C, C_pad, working_budget,
                                 x_itemsize, w_itemsize, w_buffers=2))
        TB = max(8, _round_up(TB, 8))
        grid = (pl.cdiv(B, TB), D_pad // TK)
        return pl.pallas_call(
            _logreg_kernel_kblocked,
            out_shape=out_shape,
            grid_spec=pltpu.PrefetchScalarGridSpec(
                num_scalar_prefetch=0,
                grid=grid,
                in_specs=[
                    pl.BlockSpec((TB, TK), lambda i, k: (i, k)),
                    pl.BlockSpec((TK, C_pad), lambda i, k: (k, 0)),
                    pl.BlockSpec((1, C_pad), lambda i, k: (0, 0), **w_kwargs),
                ],
                out_specs=pl.BlockSpec((TB, C), lambda i, k: (i, 0)),
                scratch_shapes=[pltpu.VMEM((TB, C_pad), jnp.float32)],
            ),
            compiler_params=pltpu.CompilerParams(
                dimension_semantics=("parallel", "arbitrary"),
                vmem_limit_bytes=vmem_limit),
        )(x_k, w_k, b_p)

    try:
        return build_and_call(True)
    except Exception:
        # Buffered(1) is purely a VMEM optimization; retry with default
        # double-buffering if this jax/libtpu combination rejects it.
        return build_and_call(False)


def init_params(key, input_dim, n_classes):
    # Mirrors init_model(): xavier_uniform_ on weight, zeros on bias.
    limit = math.sqrt(6.0 / (input_dim + n_classes))
    # torch weight is (n_classes, input_dim); we store its transpose (D, C).
    w_t = jax.random.uniform(key, (input_dim, n_classes),
                             minval=-limit, maxval=limit, dtype=jnp.float32)
    b = jnp.zeros((n_classes,), dtype=jnp.float32)
    return w_t, b


def _reference(x, w, b, compute_dtype=jnp.bfloat16):
    # Matches the kernel's numerics: bf16 inputs, f32 accumulate, f32 softmax.
    xc = x.astype(compute_dtype).astype(jnp.float32)
    wc = w.astype(compute_dtype).astype(jnp.float32)
    return jax.nn.softmax(xc @ wc + b, axis=-1)


if __name__ == "__main__":
    key = jax.random.PRNGKey(0)
    k1, k2, k3, k4 = jax.random.split(key, 4)

    # --- case 1: plain path (batch=8, input_dim=32, n_classes=16) ----------
    B, D, C = 8, 32, 16
    x = jax.random.normal(k1, (B, D), dtype=jnp.float32)
    w_t, b = init_params(k2, D, C)
    probs = jax.block_until_ready(logistic_regression_forward(x, w_t, b))
    ref = _reference(x, w_t, b)
    assert probs.shape == (B, C)
    assert jnp.allclose(probs, ref, atol=2e-3, rtol=2e-3), \
        float(jnp.max(jnp.abs(probs - ref)))
    assert jnp.allclose(jnp.sum(probs, axis=-1), 1.0, atol=1e-3)

    # --- case 2: K-blocked path + partial (masked) last batch tile ---------
    B2, D2, C2 = 20, 256, 10
    x2 = jax.random.normal(k3, (B2, D2), dtype=jnp.float32)
    w2, b2 = init_params(k4, D2, C2)
    b2 = b2 + 0.1 * jnp.arange(C2, dtype=jnp.float32)   # non-trivial bias
    probs2 = jax.block_until_ready(
        logistic_regression_forward(x2, w2, b2, block_batch=8, block_k=128))
    ref2 = _reference(x2, w2, b2)
    assert probs2.shape == (B2, C2)
    assert jnp.allclose(probs2, ref2, atol=2e-3, rtol=2e-3), \
        float(jnp.max(jnp.abs(probs2 - ref2)))
    assert jnp.allclose(jnp.sum(probs2, axis=-1), 1.0, atol=1e-3)

    print("KERNEL_OK")
</pallas_src>

<mosaic_0001>
module attributes {stable_mosaic.version = 11 : i64} {
  func.func @_logreg_kernel(%arg0: i32, %arg1: memref<8x32xbf16, #tpu.memory_space<vmem>>, %arg2: memref<32x128xbf16, #tpu.memory_space<vmem>>, %arg3: memref<1x128xf32, #tpu.memory_space<vmem>>, %arg4: memref<8x16xf32, #tpu.memory_space<vmem>>) attributes {dimension_semantics = [#tpu.dimension_semantics<parallel>], iteration_bounds = array<i64: 1>, scalar_prefetch = 0 : i64, scratch_operands = 0 : i64, tpu.core_type = #tpu.core_type<tc>, window_params = [{transform_indices = @transform_0, window_bounds = array<i64: 8, 32>}, {pipeline_mode = #tpu.pipeline_mode<synchronous>, transform_indices = @transform_1, window_bounds = array<i64: 32, 128>}, {pipeline_mode = #tpu.pipeline_mode<synchronous>, transform_indices = @transform_2, window_bounds = array<i64: 1, 128>}, {transform_indices = @transform_3, window_bounds = array<i64: 8, 16>}]} {
    %c0 = arith.constant 0 : index
    %c0_0 = arith.constant 0 : index
    %0 = vector.load %arg1[%c0, %c0_0] : memref<8x32xbf16, #tpu.memory_space<vmem>>, vector<8x32xbf16>
    %c0_1 = arith.constant 0 : index
    %c0_2 = arith.constant 0 : index
    %1 = vector.load %arg2[%c0_1, %c0_2] : memref<32x128xbf16, #tpu.memory_space<vmem>>, vector<32x128xbf16>
    %cst = arith.constant dense<0.000000e+00> : vector<8x128xf32>
    %2 = tpu.matmul %0, %1, %cst {dimension_numbers = #tpu.dot_dimension_numbers<[1], [0], [0], [1], [0, 0, 1, 1], [], []>} : vector<8x32xbf16>, vector<32x128xbf16>, vector<8x128xf32> -> vector<8x128xf32>
    %c0_3 = arith.constant 0 : index
    %c0_4 = arith.constant 0 : index
    %3 = vector.load %arg3[%c0_3, %c0_4] : memref<1x128xf32, #tpu.memory_space<vmem>>, vector<1x128xf32>
    %4 = vector.broadcast %3 : vector<1x128xf32> to vector<8x128xf32>
    %5 = arith.addf %2, %4 : vector<8x128xf32>
    %cst_5 = arith.constant dense<0xFF800000> : vector<8xf32>
    %6 = vector.multi_reduction <maximumf>, %5, %cst_5 [1] : vector<8x128xf32> to vector<8xf32>
    %7 = vector.shape_cast %6 : vector<8xf32> to vector<8x1xf32>
    %8 = vector.broadcast %7 : vector<8x1xf32> to vector<8x128xf32>
    %9 = arith.subf %5, %8 : vector<8x128xf32>
    %10 = math.exp %9 : vector<8x128xf32>
    %cst_6 = arith.constant dense<0.000000e+00> : vector<8xf32>
    %11 = vector.multi_reduction <add>, %10, %cst_6 [1] : vector<8x128xf32> to vector<8xf32>
    %12 = vector.shape_cast %11 : vector<8xf32> to vector<8x1xf32>
    %13 = vector.broadcast %12 : vector<8x1xf32> to vector<8x128xf32>
    %14 = arith.divf %10, %13 : vector<8x128xf32>
    %15 = vector.extract_strided_slice %14 {offsets = [0, 0], sizes = [8, 16], strides = [1, 1]} : vector<8x128xf32> to vector<8x16xf32>
    %c0_7 = arith.constant 0 : index
    %c0_8 = arith.constant 0 : index
    %16 = vector.load %arg4[%c0_7, %c0_8] : memref<8x16xf32, #tpu.memory_space<vmem>>, vector<8x16xf32>
    tpu.vector_store %arg4[%c0_7, %c0_8], %15 {strides = array<i32>} : memref<8x16xf32, #tpu.memory_space<vmem>>, vector<8x16xf32>,
    return
  }
  func.func @transform_0(%arg0: i32) -> (i32, i32) {
    %c0_i32 = arith.constant 0 : i32
    %c0_i32_0 = arith.constant 0 : i32
    return %arg0, %c0_i32 : i32, i32
  }
  func.func @transform_1(%arg0: i32) -> (i32, i32) {
    %c0_i32 = arith.constant 0 : i32
    %c0_i32_0 = arith.constant 0 : i32
    %c0_i32_1 = arith.constant 0 : i32
    return %c0_i32, %c0_i32_0 : i32, i32
  }
  func.func @transform_2(%arg0: i32) -> (i32, i32) {
    %c0_i32 = arith.constant 0 : i32
    %c0_i32_0 = arith.constant 0 : i32
    %c0_i32_1 = arith.constant 0 : i32
    return %c0_i32, %c0_i32_0 : i32, i32
  }
  func.func @transform_3(%arg0: i32) -> (i32, i32) {
    %c0_i32 = arith.constant 0 : i32
    %c0_i32_0 = arith.constant 0 : i32
    return %arg0, %c0_i32 : i32, i32
  }
}

module attributes {stable_mosaic.version = 11 : i64} {
  func.func @_logreg_kernel(%arg0: i32, %arg1: memref<8x32xbf16, #tpu.memory_space<vmem>>, %arg2: memref<32x128xbf16, #tpu.memory_space<vmem>>, %arg3: memref<1x128xf32, #tpu.memory_space<vmem>>, %arg4: memref<8x16xf32, #tpu.memory_space<vmem>>) attributes {dimension_semantics = [#tpu.dimension_semantics<parallel>], iteration_bounds = array<i64: 1>, scalar_prefetch = 0 : i64, scratch_operands = 0 : i64, tpu.core_type = #tpu.core_type<tc>, window_params = [{transform_indices = @transform_0, window_bounds = array<i64: 8, 32>}, {pipeline_mode = #tpu.pipeline_mode<synchronous>, transform_indices = @transform_1, window_bounds = array<i64: 32, 128>}, {pipeline_mode = #tpu.pipeline_mode<synchronous>, transform_indices = @transform_2, window_bounds = array<i64: 1, 128>}, {transform_indices = @transform_3, window_bounds = array<i64: 8, 16>}]} {
    %c0 = arith.constant 0 : index
    %c0_0 = arith.constant 0 : index
    %0 = vector.load %arg1[%c0, %c0_0] : memref<8x32xbf16, #tpu.memory_space<vmem>>, vector<8x32xbf16>
    %c0_1 = arith.constant 0 : index
    %c0_2 = arith.constant 0 : index
    %1 = vector.load %arg2[%c0_1, %c0_2] : memref<32x128xbf16, #tpu.memory_space<vmem>>, vector<32x128xbf16>
    %cst = arith.constant dense<0.000000e+00> : vector<8x128xf32>
    %2 = tpu.matmul %0, %1, %cst {dimension_numbers = #tpu.dot_dimension_numbers<[1], [0], [0], [1], [0, 0, 1, 1], [], []>} : vector<8x32xbf16>, vector<32x128xbf16>, vector<8x128xf32> -> vector<8x128xf32>
    %c0_3 = arith.constant 0 : index
    %c0_4 = arith.constant 0 : index
    %3 = vector.load %arg3[%c0_3, %c0_4] : memref<1x128xf32, #tpu.memory_space<vmem>>, vector<1x128xf32>
    %4 = vector.broadcast %3 : vector<1x128xf32> to vector<8x128xf32>
    %5 = arith.addf %2, %4 : vector<8x128xf32>
    %cst_5 = arith.constant dense<0xFF800000> : vector<8xf32>
    %6 = vector.multi_reduction <maximumf>, %5, %cst_5 [1] : vector<8x128xf32> to vector<8xf32>
    %7 = vector.shape_cast %6 : vector<8xf32> to vector<8x1xf32>
    %8 = vector.broadcast %7 : vector<8x1xf32> to vector<8x128xf32>
    %9 = arith.subf %5, %8 : vector<8x128xf32>
    %10 = math.exp %9 : vector<8x128xf32>
    %cst_6 = arith.constant dense<0.000000e+00> : vector<8xf32>
    %11 = vector.multi_reduction <add>, %10, %cst_6 [1] : vector<8x128xf32> to vector<8xf32>
    %12 = vector.shape_cast %11 : vector<8xf32> to vector<8x1xf32>
    %13 = vector.broadcast %12 : vector<8x1xf32> to vector<8x128xf32>
    %14 = arith.divf %10, %13 : vector<8x128xf32>
    %15 = vector.extract_strided_slice %14 {offsets = [0, 0], sizes = [8, 16], strides = [1, 1]} : vector<8x128xf32> to vector<8x16xf32>
    %c0_7 = arith.constant 0 : index
    %c0_8 = arith.constant 0 : index
    %16 = vector.load %arg4[%c0_7, %c0_8] : memref<8x16xf32, #tpu.memory_space<vmem>>, vector<8x16xf32>
    tpu.vector_store %arg4[%c0_7, %c0_8], %15 {strides = array<i32>} : memref<8x16xf32, #tpu.memory_space<vmem>>, vector<8x16xf32>,
    return
  }
  func.func @transform_0(%arg0: i32) -> (i32, i32) {
    %c0_i32 = arith.constant 0 : i32
    %c0_i32_0 = arith.constant 0 : i32
    return %arg0, %c0_i32 : i32, i32
  }
  func.func @transform_1(%arg0: i32) -> (i32, i32) {
    %c0_i32 = arith.constant 0 : i32
    %c0_i32_0 = arith.constant 0 : i32
    %c0_i32_1 = arith.constant 0 : i32
    return %c0_i32, %c0_i32_0 : i32, i32
  }
  func.func @transform_2(%arg0: i32) -> (i32, i32) {
    %c0_i32 = arith.constant 0 : i32
    %c0_i32_0 = arith.constant 0 : i32
    %c0_i32_1 = arith.constant 0 : i32
    return %c0_i32, %c0_i32_0 : i32, i32
  }
  func.func @transform_3(%arg0: i32) -> (i32, i32) {
    %c0_i32 = arith.constant 0 : i32
    %c0_i32_0 = arith.constant 0 : i32
    return %arg0, %c0_i32 : i32, i32
  }
}

</mosaic_0001>

<llo_original>
// kernel: tpu_custom_call.1
$region0: #{tpu_custom_call.1}
  #allocation0 [shape = 'u32[]', space=smem, size = 0x4, offset = 0x4, fixed_abs, tag = 'smem constant byte address 0x4 - core index']
  #allocation1 [shape = 'u32[144,128]{1,0:T(1,128)}', space=vmem, size = 0x12000, scoped, tag = 'internal scratch']
  %s0 = inlined_call_operand.hbm [shape: bf16[8,32], index: 0, kind: input, shape index: {}]
  %s1 = inlined_call_operand.hbm [shape: bf16[32,128], index: 1, kind: input, shape index: {}]
  %s2 = inlined_call_operand.vmem [shape: f32[1,128], index: 2, kind: input, shape index: {}]
  %s3 = inlined_call_operand.hbm [shape: f32[8,16], index: 3, kind: output, shape index: {}]
  %s4 = sld [smem:[#allocation0]]
  $region30: #{tpu_custom_call.1} parent=0
    _
  %s6 = ssub.s32 1, %s4
  %s7 = scalar_select 0, %s6, %s4
  $region1: #{tpu_custom_call.1} parent=0
    #allocation2 [shape = 'u8[2048]{0}', space=vmem, size = 0x800, scoped, tag = 'input window, operand 0, single buffered']
    #allocation3 [shape = 's32[1]{0}', space=sflag, size = 0x4, scoped, tag = 'scoped memory for tpu_custom_call.1']
    #allocation4 [shape = 's32[1]{0}', space=sflag, size = 0x4, scoped, tag = 'scoped memory for tpu_custom_call.1']
    #allocation5 [shape = 'u8[8192]{0}', space=vmem, size = 0x2000, scoped, tag = 'input window, operand 1, single buffered']
    #allocation6 [shape = 's32[1]{0}', space=sflag, size = 0x4, scoped, tag = 'scoped memory for tpu_custom_call.1']
    #allocation7 [shape = 'u8[4096]{0}', space=vmem, size = 0x1000, scoped, tag = 'output window, operand 0, single buffered']
    %8 = vsyncpa [#allocation3], 0
    %9 = vsyncpa [#allocation6], 0
    %10 = vsyncpa [#allocation4], 0
    // Predicated region
    $region2: #{tpu_custom_call.1} parent=1 // pred_check
      _
    $region3: #{tpu_custom_call.1} parent=1 // pred_check_branch
      %12 = sbr.rel (0) target = $region5
    $region4: #{tpu_custom_call.1} parent=1 // pred_region
      %s14 = ssub.s32 64, 64
      %15 = vsyncadd [#allocation3], %s14
      %s17 = sshll.u32 [#allocation2], 4
      %s18 = int_to_ptr.vmem [resolvable:$true] %s17
      %20 = dma.hbm_to_vmem [thread:$0]  %s0, 64, %s18, [#allocation3]
    $region5: #{tpu_custom_call.1} parent=1 // pred_fallthru
      _
    // Predicated region
    $region6: #{tpu_custom_call.1} parent=1 // pred_check
      _
    $region7: #{tpu_custom_call.1} parent=1 // pred_check_branch
      %22 = sbr.rel (0) target = $region9
    $region8: #{tpu_custom_call.1} parent=1 // pred_region
      %s24 = ssub.s32 256, 256
      %25 = vsyncadd [#allocation6], %s24
      %s26 = sshll.u32 [#allocation5], 4
      %s27 = int_to_ptr.vmem [resolvable:$true] %s26
      %32 = dma.hbm_to_vmem [thread:$0]  %s1, 256, %s27, [#allocation6], 64, 64, 4
    $region9: #{tpu_custom_call.1} parent=1 // pred_fallthru
      _
    // Predicated region
    $region10: #{tpu_custom_call.1} parent=1 // pred_check
      _
    $region11: #{tpu_custom_call.1} parent=1 // pred_check_branch
      %34 = sbr.rel (0) target = $region13
    $region12: #{tpu_custom_call.1} parent=1 // pred_region
      _
    $region13: #{tpu_custom_call.1} parent=1 // pred_fallthru
      _
    // Predicated region
    $region14: #{tpu_custom_call.1} parent=1 // pred_check
      _
    $region15: #{tpu_custom_call.1} parent=1 // pred_check_branch
      %36 = sbr.rel (0) target = $region17
    $region16: #{tpu_custom_call.1} parent=1 // pred_region
      %37 = dma.done [#allocation3], 64
    $region17: #{tpu_custom_call.1} parent=1 // pred_fallthru
      _
    // Predicated region
    $region18: #{tpu_custom_call.1} parent=1 // pred_check
      _
    $region19: #{tpu_custom_call.1} parent=1 // pred_check_branch
      %39 = sbr.rel (0) target = $region21
    $region20: #{tpu_custom_call.1} parent=1 // pred_region
      %40 = dma.done [#allocation6], 256
    $region21: #{tpu_custom_call.1} parent=1 // pred_fallthru
      _
    %v42 = vld [vmem:[#allocation2] sm:$0xf]
    %v43 = vld [vmem:[#allocation5] sm:$0xf]
    %v44 = vld [vmem:[#allocation5 + $0x4] sm:$0xf]
    %v45 = vld [vmem:[#allocation5 + $0x8] sm:$0xf]
    %v46 = vld [vmem:[#allocation5 + $0xc] sm:$0xf]
    %v47 = vld [vmem:[%s2] sm:$0x1]
    %v49 = vlaneseq
    %v50 = vshrl.u32 %v49, 7
    %v51 = vsub.s32 0, %v50
    %v52 = vrot.slane %v47, %v51
    %v58 = vunpack.c.l.b16 %v43
    %v59 = vunpack.c.l.b16 %v44
    %v60 = vunpack.c.l.b16 %v45
    %v61 = vunpack.c.l.b16 %v46
    %v62 = vpack.c.b16 %v59, %v58
    %v63 = vpack.c.b16 %v61, %v60
    %vm66 = vcmask 261120
    %v68 = vsel %vm66, %v42, 0
    %70 = vmatprep.subr.bf16.mxu0 0
    %71 = vmatpush1.bf16.msra.mxu0 %v62
    %72 = vmatprep.subr.bf16.mxu0 0
    %73 = vmatpush1.bf16.msra.mxu0 %v63
    %74 = vmatprep.subr.bf16.mxu0 0
    %75 = vmatpush1.bf16.msra.mxu0 0
    %76 = vmatprep.subr.bf16.mxu0 0
    %77 = vmatpush1.bf16.msra.mxu0 0
    %78 = vmatprep.subr.bf16.mxu0 0
    %79 = vmatpush1.bf16.msra.mxu0 0
    %80 = vmatprep.subr.bf16.mxu0 0
    %81 = vmatpush1.bf16.msra.mxu0 0
    %82 = vmatprep.subr.bf16.mxu0 0
    %83 = vmatpush1.bf16.msra.mxu0 0
    %84 = vmatprep.subr.bf16.mxu0 0
    %85 = vmatpush1.bf16.msra.mxu0 0
    %86 = vmatprep.subr.bf16.mxu0 0
    %87 = vmatpush1.bf16.msra.mxu0 0
    %88 = vmatprep.subr.bf16.mxu0 0
    %89 = vmatpush1.bf16.msra.mxu0 0
    %90 = vmatprep.subr.bf16.mxu0 0
    %91 = vmatpush1.bf16.msra.mxu0 0
    %92 = vmatprep.subr.bf16.mxu0 0
    %93 = vmatpush1.bf16.msra.mxu0 0
    %94 = vmatprep.subr.bf16.mxu0 0
    %95 = vmatpush1.bf16.msra.mxu0 0
    %96 = vmatprep.subr.bf16.mxu0 0
    %97 = vmatpush1.bf16.msra.mxu0 0
    %98 = vmatprep.subr.bf16.mxu0 0
    %99 = vmatpush1.bf16.msra.mxu0 0
    %100 = vmatprep.subr.bf16.mxu0 0
    %101 = vmatpush1.bf16.msra.mxu0 0
    %102 = vmatprep.mubr.bf16.mxu0 0
    %103 = vmatmul.mubr.bf16.gmra.mrb[0].mxu0 %v68
    %v104 = vpop.f32.mrb[0].mxu0
    %v105 = vadd.f32 %v52, %v104
    %v106 = vpop.f32.mrb[0].mxu0
    %v107 = vpop.f32.mrb[0].mxu0
    %v108 = vpop.f32.mrb[0].mxu0
    %109 = vdwg.mxu0
    %110 = vmax.xlane.f32.xlu0 %v105
    %v111 = vpop.xlane.xlu0 %110
    %v112 = vsub.f32 %v105, %v111
    %v113 = vmul.f32 %v112, 1.442695
    %v114 = vpow.pop %v113
    %115 = vadd.xlane.f32.xlu0 %v114
    %v116 = vpop.xlane.xlu0 %115
    %v117 = vrcp.pop %v116
    %v118 = vmul.f32 %v114, %v117
    %vm119 = vcmask 130048
    %120 = vst.msk [vmem:[#allocation7] sm:$0xff] %vm119, %v118
    // Predicated region
    $region22: #{tpu_custom_call.1} parent=1 // pred_check
      _
    $region23: #{tpu_custom_call.1} parent=1 // pred_check_branch
      %122 = sbr.rel (0) target = $region25
    $region24: #{tpu_custom_call.1} parent=1 // pred_region
      %s124 = ssub.s32 128, 128
      %125 = vsyncadd [#allocation4], %s124
      %s127 = sshll.u32 [#allocation7], 4
      %s128 = int_to_ptr.vmem [resolvable:$true] %s127
      %130 = dma.vmem_to_hbm [thread:$0]  %s128, 128, %s3, [#allocation4]
    $region25: #{tpu_custom_call.1} parent=1 // pred_fallthru
      _
    // Predicated region
    $region26: #{tpu_custom_call.1} parent=1 // pred_check
      _
    $region27: #{tpu_custom_call.1} parent=1 // pred_check_branch
      %132 = sbr.rel (0) target = $region29
    $region28: #{tpu_custom_call.1} parent=1 // pred_region
      %133 = dma.done [#allocation4], 128
    $region29: #{tpu_custom_call.1} parent=1 // pred_fallthru
      _
    %134 = vsyncpa [#allocation3], 1
    %135 = vsyncpa [#allocation6], 1
    %136 = vsyncpa [#allocation4], 1

// kernel: tpu_custom_call.1
$region0: #{tpu_custom_call.1}
  #allocation0 [shape = 'u32[]', space=smem, size = 0x4, offset = 0x4, fixed_abs, tag = 'smem constant byte address 0x4 - core index']
  #allocation1 [shape = 'u32[144,128]{1,0:T(1,128)}', space=vmem, size = 0x12000, scoped, tag = 'internal scratch']
  %s0 = inlined_call_operand.hbm [shape: bf16[8,32], index: 0, kind: input, shape index: {}]
  %s1 = inlined_call_operand.hbm [shape: bf16[32,128], index: 1, kind: input, shape index: {}]
  %s2 = inlined_call_operand.vmem [shape: f32[1,128], index: 2, kind: input, shape index: {}]
  %s3 = inlined_call_operand.hbm [shape: f32[8,16], index: 3, kind: output, shape index: {}]
  %s4 = sld [smem:[#allocation0]]
  $region30: #{tpu_custom_call.1} parent=0
    _
  %s6 = ssub.s32 1, %s4
  %s7 = scalar_select 0, %s6, %s4
  $region1: #{tpu_custom_call.1} parent=0
    #allocation2 [shape = 'u8[2048]{0}', space=vmem, size = 0x800, scoped, tag = 'input window, operand 0, single buffered']
    #allocation3 [shape = 's32[1]{0}', space=sflag, size = 0x4, scoped, tag = 'scoped memory for tpu_custom_call.1']
    #allocation4 [shape = 's32[1]{0}', space=sflag, size = 0x4, scoped, tag = 'scoped memory for tpu_custom_call.1']
    #allocation5 [shape = 'u8[8192]{0}', space=vmem, size = 0x2000, scoped, tag = 'input window, operand 1, single buffered']
    #allocation6 [shape = 's32[1]{0}', space=sflag, size = 0x4, scoped, tag = 'scoped memory for tpu_custom_call.1']
    #allocation7 [shape = 'u8[4096]{0}', space=vmem, size = 0x1000, scoped, tag = 'output window, operand 0, single buffered']
    %8 = vsyncpa [#allocation3], 0
    %9 = vsyncpa [#allocation6], 0
    %10 = vsyncpa [#allocation4], 0
    // Predicated region
    $region2: #{tpu_custom_call.1} parent=1 // pred_check
      _
    $region3: #{tpu_custom_call.1} parent=1 // pred_check_branch
      %12 = sbr.rel (0) target = $region5
    $region4: #{tpu_custom_call.1} parent=1 // pred_region
      %s14 = ssub.s32 64, 64
      %15 = vsyncadd [#allocation3], %s14
      %s17 = sshll.u32 [#allocation2], 4
      %s18 = int_to_ptr.vmem [resolvable:$true] %s17
      %20 = dma.hbm_to_vmem [thread:$0]  %s0, 64, %s18, [#allocation3]
    $region5: #{tpu_custom_call.1} parent=1 // pred_fallthru
      _
    // Predicated region
    $region6: #{tpu_custom_call.1} parent=1 // pred_check
      _
    $region7: #{tpu_custom_call.1} parent=1 // pred_check_branch
      %22 = sbr.rel (0) target = $region9
    $region8: #{tpu_custom_call.1} parent=1 // pred_region
      %s24 = ssub.s32 256, 256
      %25 = vsyncadd [#allocation6], %s24
      %s26 = sshll.u32 [#allocation5], 4
      %s27 = int_to_ptr.vmem [resolvable:$true] %s26
      %32 = dma.hbm_to_vmem [thread:$0]  %s1, 256, %s27, [#allocation6], 64, 64, 4
    $region9: #{tpu_custom_call.1} parent=1 // pred_fallthru
      _
    // Predicated region
    $region10: #{tpu_custom_call.1} parent=1 // pred_check
      _
    $region11: #{tpu_custom_call.1} parent=1 // pred_check_branch
      %34 = sbr.rel (0) target = $region13
    $region12: #{tpu_custom_call.1} parent=1 // pred_region
      _
    $region13: #{tpu_custom_call.1} parent=1 // pred_fallthru
      _
    // Predicated region
    $region14: #{tpu_custom_call.1} parent=1 // pred_check
      _
    $region15: #{tpu_custom_call.1} parent=1 // pred_check_branch
      %36 = sbr.rel (0) target = $region17
    $region16: #{tpu_custom_call.1} parent=1 // pred_region
      %37 = dma.done [#allocation3], 64
    $region17: #{tpu_custom_call.1} parent=1 // pred_fallthru
      _
    // Predicated region
    $region18: #{tpu_custom_call.1} parent=1 // pred_check
      _
    $region19: #{tpu_custom_call.1} parent=1 // pred_check_branch
      %39 = sbr.rel (0) target = $region21
    $region20: #{tpu_custom_call.1} parent=1 // pred_region
      %40 = dma.done [#allocation6], 256
    $region21: #{tpu_custom_call.1} parent=1 // pred_fallthru
      _
    %v42 = vld [vmem:[#allocation2] sm:$0xf]
    %v43 = vld [vmem:[#allocation5] sm:$0xf]
    %v44 = vld [vmem:[#allocation5 + $0x4] sm:$0xf]
    %v45 = vld [vmem:[#allocation5 + $0x8] sm:$0xf]
    %v46 = vld [vmem:[#allocation5 + $0xc] sm:$0xf]
    %v47 = vld [vmem:[%s2] sm:$0x1]
    %v49 = vlaneseq
    %v50 = vshrl.u32 %v49, 7
    %v51 = vsub.s32 0, %v50
    %v52 = vrot.slane %v47, %v51
    %v58 = vunpack.c.l.b16 %v43
    %v59 = vunpack.c.l.b16 %v44
    %v60 = vunpack.c.l.b16 %v45
    %v61 = vunpack.c.l.b16 %v46
    %v62 = vpack.c.b16 %v59, %v58
    %v63 = vpack.c.b16 %v61, %v60
    %vm66 = vcmask 261120
    %v68 = vsel %vm66, %v42, 0
    %70 = vmatprep.subr.bf16.mxu0 0
    %71 = vmatpush1.bf16.msra.mxu0 %v62
    %72 = vmatprep.subr.bf16.mxu0 0
    %73 = vmatpush1.bf16.msra.mxu0 %v63
    %74 = vmatprep.subr.bf16.mxu0 0
    %75 = vmatpush1.bf16.msra.mxu0 0
    %76 = vmatprep.subr.bf16.mxu0 0
    %77 = vmatpush1.bf16.msra.mxu0 0
    %78 = vmatprep.subr.bf16.mxu0 0
    %79 = vmatpush1.bf16.msra.mxu0 0
    %80 = vmatprep.subr.bf16.mxu0 0
    %81 = vmatpush1.bf16.msra.mxu0 0
    %82 = vmatprep.subr.bf16.mxu0 0
    %83 = vmatpush1.bf16.msra.mxu0 0
    %84 = vmatprep.subr.bf16.mxu0 0
    %85 = vmatpush1.bf16.msra.mxu0 0
    %86 = vmatprep.subr.bf16.mxu0 0
    %87 = vmatpush1.bf16.msra.mxu0 0
    %88 = vmatprep.subr.bf16.mxu0 0
    %89 = vmatpush1.bf16.msra.mxu0 0
    %90 = vmatprep.subr.bf16.mxu0 0
    %91 = vmatpush1.bf16.msra.mxu0 0
    %92 = vmatprep.subr.bf16.mxu0 0
    %93 = vmatpush1.bf16.msra.mxu0 0
    %94 = vmatprep.subr.bf16.mxu0 0
    %95 = vmatpush1.bf16.msra.mxu0 0
    %96 = vmatprep.subr.bf16.mxu0 0
    %97 = vmatpush1.bf16.msra.mxu0 0
    %98 = vmatprep.subr.bf16.mxu0 0
    %99 = vmatpush1.bf16.msra.mxu0 0
    %100 = vmatprep.subr.bf16.mxu0 0
    %101 = vmatpush1.bf16.msra.mxu0 0
    %102 = vmatprep.mubr.bf16.mxu0 0
    %103 = vmatmul.mubr.bf16.gmra.mrb[0].mxu0 %v68
    %v104 = vpop.f32.mrb[0].mxu0
    %v105 = vadd.f32 %v52, %v104
    %v106 = vpop.f32.mrb[0].mxu0
    %v107 = vpop.f32.mrb[0].mxu0
    %v108 = vpop.f32.mrb[0].mxu0
    %109 = vdwg.mxu0
    %110 = vmax.xlane.f32.xlu0 %v105
    %v111 = vpop.xlane.xlu0 %110
    %v112 = vsub.f32 %v105, %v111
    %v113 = vmul.f32 %v112, 1.442695
    %v114 = vpow.pop %v113
    %115 = vadd.xlane.f32.xlu0 %v114
    %v116 = vpop.xlane.xlu0 %115
    %v117 = vrcp.pop %v116
    %v118 = vmul.f32 %v114, %v117
    %vm119 = vcmask 130048
    %120 = vst.msk [vmem:[#allocation7] sm:$0xff] %vm119, %v118
    // Predicated region
    $region22: #{tpu_custom_call.1} parent=1 // pred_check
      _
    $region23: #{tpu_custom_call.1} parent=1 // pred_check_branch
      %122 = sbr.rel (0) target = $region25
    $region24: #{tpu_custom_call.1} parent=1 // pred_region
      %s124 = ssub.s32 128, 128
      %125 = vsyncadd [#allocation4], %s124
      %s127 = sshll.u32 [#allocation7], 4
      %s128 = int_to_ptr.vmem [resolvable:$true] %s127
      %130 = dma.vmem_to_hbm [thread:$0]  %s128, 128, %s3, [#allocation4]
    $region25: #{tpu_custom_call.1} parent=1 // pred_fallthru
      _
    // Predicated region
    $region26: #{tpu_custom_call.1} parent=1 // pred_check
      _
    $region27: #{tpu_custom_call.1} parent=1 // pred_check_branch
      %132 = sbr.rel (0) target = $region29
    $region28: #{tpu_custom_call.1} parent=1 // pred_region
      %133 = dma.done [#allocation4], 128
    $region29: #{tpu_custom_call.1} parent=1 // pred_fallthru
      _
    %134 = vsyncpa [#allocation3], 1
    %135 = vsyncpa [#allocation6], 1
    %136 = vsyncpa [#allocation4], 1

</llo_original>
